<compile_context>
chip_gen: v6e
topology: v6e:2x2x1
jax: 0.10.0
libtpu: 0.0.40
codegen_flags: <defaults>
</compile_context>

<pallas_src>
import functools
import math

import jax
import jax.numpy as jnp
from jax.experimental import pallas as pl
from jax.experimental.pallas import tpu as pltpu


def sublayer_connection_kernel(x_ref, w_ref, bias_ref, a2_ref, b2_ref, o_ref, *, eps):
    # x_ref: (tm, D) row tile (f32); w_ref: (D, D) bf16; bias/a2/b2: (1, D) f32.
    x = x_ref[...].astype(jnp.float32)
    d = x.shape[-1]

    # --- LayerNorm (matches torch: unbiased std, (std + eps) denominator) ---
    mean = jnp.mean(x, axis=-1, keepdims=True)
    xc = x - mean
    var_unbiased = jnp.sum(xc * xc, axis=-1, keepdims=True) * (1.0 / (d - 1))
    std = jnp.sqrt(var_unbiased)
    inv = pl.reciprocal(std + eps, approx=True)     # EUP slot; frees the VALU divide
    xn = a2_ref[...] * xc * inv + b2_ref[...]

    # --- sublayer: Linear(D, D) on the MXU (bf16 inputs, f32 accumulate) ---
    y = jnp.dot(xn.astype(w_ref.dtype), w_ref[...],
                preferred_element_type=jnp.float32) + bias_ref[...]

    # --- dropout (eval mode => identity) + residual add ---
    # TODO(synk): training-mode dropout would need pltpu.prng_seed / prng_random_bits.
    o_ref[...] = (x + y).astype(o_ref.dtype)


def _pick_row_tile(M, D, in_bytes, out_bytes, w_bytes, tm_request, vmem_limit_bytes):
    """Largest multiple-of-8 row tile whose double-buffered I/O fits the VMEM budget."""
    budget = int(vmem_limit_bytes * 0.85)
    budget -= 2 * w_bytes              # weight (conservatively assume 2 buffers)
    budget -= 2 * 3 * D * 4            # bias / a_2 / b_2
    per_row = D * 2 * (in_bytes + out_bytes)   # double-buffered x tile + out tile
    tm_fit = max(8, (budget // per_row) // 8 * 8) if per_row > 0 else 8
    tm = min(tm_request, tm_fit)
    tm = min(tm, max(8, ((M + 7) // 8) * 8))   # don't tile beyond the problem size
    return max(8, (tm // 8) * 8)


def sublayer_connection(x, w, bias, a2, b2, *, eps=1e-6, tm=256,
                        matmul_dtype=jnp.bfloat16,
                        vmem_limit_bytes=48 * 1024 * 1024):
    """x: [B, S, D]; w: [D, D]; bias/a2/b2: [D]. Returns [B, S, D]."""
    B, S, D = x.shape
    M = B * S

    # TODO(synk): for very large D (>= 2048) the resident (D, D) weight should get an
    # extra N-tiling grid axis over its columns to fit v7x's 64 MiB VMEM.
    w_mx = w.astype(matmul_dtype)
    in_bytes = jnp.dtype(x.dtype).itemsize
    out_bytes = in_bytes
    w_bytes = D * D * jnp.dtype(matmul_dtype).itemsize
    tm = _pick_row_tile(M, D, in_bytes, out_bytes, w_bytes, tm, vmem_limit_bytes)

    grid_m = pl.cdiv(M, tm)
    Mp = grid_m * tm

    x2d = x.reshape(M, D)
    if Mp != M:
        # Padded rows normalize to b_2 (denominator is eps, no NaNs) and are sliced off.
        x2d = jnp.pad(x2d, ((0, Mp - M), (0, 0)))

    bias2d = bias.reshape(1, D).astype(jnp.float32)
    a2_2d = a2.reshape(1, D).astype(jnp.float32)
    b2_2d = b2.reshape(1, D).astype(jnp.float32)

    kernel = functools.partial(sublayer_connection_kernel, eps=eps)

    out2d = pl.pallas_call(
        kernel,
        out_shape=jax.ShapeDtypeStruct((Mp, D), x.dtype),
        grid_spec=pltpu.PrefetchScalarGridSpec(
            num_scalar_prefetch=0,
            grid=(grid_m,),
            in_specs=[
                pl.BlockSpec((tm, D), lambda i: (i, 0)),   # x rows (streamed)
                # Constant index_maps: weight/params stay resident, not re-DMA'd per step.
                pl.BlockSpec((D, D), lambda i: (0, 0)),    # sublayer weight (bf16)
                pl.BlockSpec((1, D), lambda i: (0, 0)),    # sublayer bias
                pl.BlockSpec((1, D), lambda i: (0, 0)),    # layernorm gain a_2
                pl.BlockSpec((1, D), lambda i: (0, 0)),    # layernorm bias b_2
            ],
            out_specs=pl.BlockSpec((tm, D), lambda i: (i, 0)),
        ),
        compiler_params=pltpu.CompilerParams(
            dimension_semantics=("parallel",),   # row axis shardable across v7x's 2 TCs
            vmem_limit_bytes=vmem_limit_bytes,
        ),
    )(x2d, w_mx, bias2d, a2_2d, b2_2d)

    if Mp != M:
        out2d = out2d[:M]
    return out2d.reshape(B, S, D)


def reference(x, w, bias, a2, b2, eps=1e-6):
    """Pure-f32 reference with exact PyTorch semantics (unbiased std, std + eps)."""
    xf = x.astype(jnp.float32)
    d = xf.shape[-1]
    mean = jnp.mean(xf, axis=-1, keepdims=True)
    std = jnp.sqrt(jnp.sum((xf - mean) ** 2, axis=-1, keepdims=True) / (d - 1))
    xn = a2 * (xf - mean) / (std + eps) + b2
    y = xn @ w + bias
    return (xf + y).astype(x.dtype)


if __name__ == "__main__":
    # Small but lane-dense shapes: D=128 fills the TPU lane dimension; M = 4*100 = 400
    # rows exercises the cdiv + padding path (padded to 512 rows -> grid of 2 tiles).
    B, S, D = 4, 100, 128
    key = jax.random.PRNGKey(0)
    kx, kw, kb = jax.random.split(key, 3)

    x = jax.random.normal(kx, (B, S, D), dtype=jnp.float32)

    # Deterministic parameter init (shapes per the module's __init__):
    # LayerNorm: a_2 = ones(D), b_2 = zeros(D); sublayer Linear(D, D).
    a2 = jnp.ones((D,), dtype=jnp.float32)
    b2 = jnp.zeros((D,), dtype=jnp.float32)
    w = jax.random.normal(kw, (D, D), dtype=jnp.float32) * (1.0 / math.sqrt(D))
    bias = jax.random.normal(kb, (D,), dtype=jnp.float32) * 0.01

    out = jax.block_until_ready(sublayer_connection(x, w, bias, a2, b2))

    ref = reference(x, w, bias, a2, b2)
    assert out.shape == ref.shape
    # Tolerance accounts for the bf16 MXU matmul (f32 accumulate) and the EUP
    # approximate reciprocal; the reference above keeps exact f32 PyTorch semantics.
    max_err = float(jnp.max(jnp.abs(out - ref)))
    assert jnp.allclose(out, ref, atol=5e-2, rtol=5e-2), f"mismatch vs reference: {max_err}"

    print("KERNEL_OK")
</pallas_src>

<mosaic_0001>
module attributes {stable_mosaic.version = 11 : i64} {
  func.func @sublayer_connection_kernel(%arg0: i32, %arg1: memref<256x128xf32, #tpu.memory_space<vmem>>, %arg2: memref<128x128xbf16, #tpu.memory_space<vmem>>, %arg3: memref<1x128xf32, #tpu.memory_space<vmem>>, %arg4: memref<1x128xf32, #tpu.memory_space<vmem>>, %arg5: memref<1x128xf32, #tpu.memory_space<vmem>>, %arg6: memref<256x128xf32, #tpu.memory_space<vmem>>) attributes {dimension_semantics = [#tpu.dimension_semantics<parallel>], iteration_bounds = array<i64: 2>, scalar_prefetch = 0 : i64, scratch_operands = 0 : i64, tpu.core_type = #tpu.core_type<tc>, window_params = [{transform_indices = @transform_0, window_bounds = array<i64: 256, 128>}, {pipeline_mode = #tpu.pipeline_mode<synchronous>, transform_indices = @transform_1, window_bounds = array<i64: 128, 128>}, {pipeline_mode = #tpu.pipeline_mode<synchronous>, transform_indices = @transform_2, window_bounds = array<i64: 1, 128>}, {pipeline_mode = #tpu.pipeline_mode<synchronous>, transform_indices = @transform_3, window_bounds = array<i64: 1, 128>}, {pipeline_mode = #tpu.pipeline_mode<synchronous>, transform_indices = @transform_4, window_bounds = array<i64: 1, 128>}, {transform_indices = @transform_5, window_bounds = array<i64: 256, 128>}]} {
    %c0 = arith.constant 0 : index
    %c0_0 = arith.constant 0 : index
    %0 = vector.load %arg1[%c0, %c0_0] : memref<256x128xf32, #tpu.memory_space<vmem>>, vector<256x128xf32>
    %cst = arith.constant dense<0.000000e+00> : vector<256xf32>
    %1 = vector.multi_reduction <add>, %0, %cst [1] : vector<256x128xf32> to vector<256xf32>
    %2 = vector.shape_cast %1 : vector<256xf32> to vector<256x1xf32>
    %cst_1 = arith.constant 1.280000e+02 : f32
    %3 = vector.broadcast %cst_1 : f32 to vector<256x1xf32>
    %4 = arith.divf %2, %3 : vector<256x1xf32>
    %5 = vector.broadcast %4 : vector<256x1xf32> to vector<256x128xf32>
    %6 = arith.subf %0, %5 : vector<256x128xf32>
    %7 = arith.mulf %6, %6 : vector<256x128xf32>
    %cst_2 = arith.constant dense<0.000000e+00> : vector<256xf32>
    %8 = vector.multi_reduction <add>, %7, %cst_2 [1] : vector<256x128xf32> to vector<256xf32>
    %9 = vector.shape_cast %8 : vector<256xf32> to vector<256x1xf32>
    %cst_3 = arith.constant 0.00787401571 : f32
    %10 = vector.broadcast %cst_3 : f32 to vector<256x1xf32>
    %11 = arith.mulf %9, %10 : vector<256x1xf32>
    %12 = math.sqrt %11 : vector<256x1xf32>
    %cst_4 = arith.constant 9.99999997E-7 : f32
    %13 = vector.broadcast %cst_4 : f32 to vector<256x1xf32>
    %14 = arith.addf %12, %13 : vector<256x1xf32>
    %15 = tpu.reciprocal %14 {approx = true} : vector<256x1xf32> -> vector<256x1xf32>
    %c0_5 = arith.constant 0 : index
    %c0_6 = arith.constant 0 : index
    %16 = vector.load %arg4[%c0_5, %c0_6] : memref<1x128xf32, #tpu.memory_space<vmem>>, vector<1x128xf32>
    %17 = vector.broadcast %16 : vector<1x128xf32> to vector<256x128xf32>
    %18 = arith.mulf %17, %6 : vector<256x128xf32>
    %19 = vector.broadcast %15 : vector<256x1xf32> to vector<256x128xf32>
    %20 = arith.mulf %18, %19 : vector<256x128xf32>
    %c0_7 = arith.constant 0 : index
    %c0_8 = arith.constant 0 : index
    %21 = vector.load %arg5[%c0_7, %c0_8] : memref<1x128xf32, #tpu.memory_space<vmem>>, vector<1x128xf32>
    %22 = vector.broadcast %21 : vector<1x128xf32> to vector<256x128xf32>
    %23 = arith.addf %20, %22 : vector<256x128xf32>
    %24 = arith.truncf %23 : vector<256x128xf32> to vector<256x128xbf16>
    %c0_9 = arith.constant 0 : index
    %c0_10 = arith.constant 0 : index
    %25 = vector.load %arg2[%c0_9, %c0_10] : memref<128x128xbf16, #tpu.memory_space<vmem>>, vector<128x128xbf16>
    %cst_11 = arith.constant dense<0.000000e+00> : vector<256x128xf32>
    %26 = tpu.matmul %24, %25, %cst_11 {dimension_numbers = #tpu.dot_dimension_numbers<[1], [0], [0], [1], [0, 0, 1, 1], [], []>} : vector<256x128xbf16>, vector<128x128xbf16>, vector<256x128xf32> -> vector<256x128xf32>
    %c0_12 = arith.constant 0 : index
    %c0_13 = arith.constant 0 : index
    %27 = vector.load %arg3[%c0_12, %c0_13] : memref<1x128xf32, #tpu.memory_space<vmem>>, vector<1x128xf32>
    %28 = vector.broadcast %27 : vector<1x128xf32> to vector<256x128xf32>
    %29 = arith.addf %26, %28 : vector<256x128xf32>
    %30 = arith.addf %0, %29 : vector<256x128xf32>
    %c0_14 = arith.constant 0 : index
    %c0_15 = arith.constant 0 : index
    %31 = vector.load %arg6[%c0_14, %c0_15] : memref<256x128xf32, #tpu.memory_space<vmem>>, vector<256x128xf32>
    tpu.vector_store %arg6[%c0_14, %c0_15], %30 {strides = array<i32>} : memref<256x128xf32, #tpu.memory_space<vmem>>, vector<256x128xf32>,
    return
  }
  func.func @transform_0(%arg0: i32) -> (i32, i32) {
    %c0_i32 = arith.constant 0 : i32
    %c0_i32_0 = arith.constant 0 : i32
    return %arg0, %c0_i32 : i32, i32
  }
  func.func @transform_1(%arg0: i32) -> (i32, i32) {
    %c0_i32 = arith.constant 0 : i32
    %c0_i32_0 = arith.constant 0 : i32
    %c0_i32_1 = arith.constant 0 : i32
    return %c0_i32, %c0_i32_0 : i32, i32
  }
  func.func @transform_2(%arg0: i32) -> (i32, i32) {
    %c0_i32 = arith.constant 0 : i32
    %c0_i32_0 = arith.constant 0 : i32
    %c0_i32_1 = arith.constant 0 : i32
    return %c0_i32, %c0_i32_0 : i32, i32
  }
  func.func @transform_3(%arg0: i32) -> (i32, i32) {
    %c0_i32 = arith.constant 0 : i32
    %c0_i32_0 = arith.constant 0 : i32
    %c0_i32_1 = arith.constant 0 : i32
    return %c0_i32, %c0_i32_0 : i32, i32
  }
  func.func @transform_4(%arg0: i32) -> (i32, i32) {
    %c0_i32 = arith.constant 0 : i32
    %c0_i32_0 = arith.constant 0 : i32
    %c0_i32_1 = arith.constant 0 : i32
    return %c0_i32, %c0_i32_0 : i32, i32
  }
  func.func @transform_5(%arg0: i32) -> (i32, i32) {
    %c0_i32 = arith.constant 0 : i32
    %c0_i32_0 = arith.constant 0 : i32
    return %arg0, %c0_i32 : i32, i32
  }
}

</mosaic_0001>

<llo_original>
// kernel: tpu_custom_call.1
$region0: #{tpu_custom_call.1}
  #allocation0 [shape = 'u32[]', space=smem, size = 0x4, offset = 0x4, fixed_abs, tag = 'smem constant byte address 0x4 - core index']
  #allocation1 [shape = 'u32[144,128]{1,0:T(1,128)}', space=vmem, size = 0x12000, scoped, tag = 'internal scratch']
  %s0 = inlined_call_operand.hbm [shape: f32[512,128], index: 0, kind: input, shape index: {}]
  %s1 = inlined_call_operand.hbm [shape: bf16[128,128], index: 1, kind: input, shape index: {}]
  %s2 = inlined_call_operand.vmem [shape: f32[1,128], index: 2, kind: input, shape index: {}]
  %s3 = inlined_call_operand.vmem [shape: f32[1,128], index: 3, kind: input, shape index: {}]
  %s4 = inlined_call_operand.vmem [shape: f32[1,128], index: 4, kind: input, shape index: {}]
  %s5 = inlined_call_operand.hbm [shape: f32[512,128], index: 5, kind: output, shape index: {}]
  %s6 = sld [smem:[#allocation0]]
  $region61: #{tpu_custom_call.1} parent=0
    _
  %s8 = ssub.s32 1, %s6
  %s9 = scalar_select 0, %s8, %s6
  $region1: #{tpu_custom_call.1} parent=0
    #allocation2 [shape = 'u8[262144]{0}', space=vmem, size = 0x40000, scoped, tag = 'input window, operand 0']
    #allocation3 [shape = 's32[2]{0}', space=sflag, size = 0x8, scoped, tag = 'scoped memory for tpu_custom_call.1']
    #allocation4 [shape = 's32[2]{0}', space=sflag, size = 0x8, scoped, tag = 'scoped memory for tpu_custom_call.1']
    #allocation5 [shape = 'u8[32768]{0}', space=vmem, size = 0x8000, scoped, tag = 'input window, operand 1, single buffered']
    #allocation6 [shape = 's32[1]{0}', space=sflag, size = 0x4, scoped, tag = 'scoped memory for tpu_custom_call.1']
    #allocation7 [shape = 'u8[262144]{0}', space=vmem, size = 0x40000, scoped, tag = 'output window, operand 0']
    %10 = vsyncpa [#allocation3], 0
    %s11 = scalar_lea.sflag [#allocation3], 1
    %12 = vsyncpa %s11, 0
    %13 = vsyncpa [#allocation6], 0
    %14 = vsyncpa [#allocation4], 0
    %s15 = scalar_lea.sflag [#allocation4], 1
    %16 = vsyncpa %s15, 0
    loop: start=0, step=1, limit=4
    $region2: #{tpu_custom_call.1} parent=1 // loop_pre_header
      _
    $region3: #{tpu_custom_call.1} parent=1 // loop_header
      %s18 = sphi 0, %s22
      %p19 = scmp.ge.s32.totalorder %s18, 4
      %s28 = sphi 0, %s30
      %s31 = sphi 0, %s28
      %s32 = sphi 0, %s31
      %s48 = sphi 0, %s32
      %s52 = sphi 0, %s52
      %s54 = sphi 0, %s52
      %s55 = sphi 0, %s54
      %s69 = sphi 0, %s55
      %s73 = sphi 0, %s73
      %s75 = sphi 0, %s73
      %s76 = sphi 0, %s75
      %s90 = sphi 0, %s76
      %s94 = sphi 0, %s94
      %s96 = sphi 0, %s94
      %s97 = sphi 0, %s96
      %s111 = sphi 0, %s97
      %s115 = sphi 0, %s115
      %s117 = sphi 0, %s115
      %s118 = sphi 0, %s117
      %s132 = sphi 0, %s118
      %s138 = sphi 0, %s140
      %s141 = sphi 0, %s138
      %s142 = sphi 0, %s141
      %s158 = sphi 0, %s142
    $region4: #{tpu_custom_call.1} parent=1 // loop_header_branch
      %21 = sbr.rel (%p19) target = $region8
    $region5: #{tpu_custom_call.1} parent=1 // loop_body
      %s23 = ssub.s32 %s18, 1
      %s24 = ssub.s32 %s18, 2
      %s25 = sadd.s32 %s18, 1
      %s26 = ssub.s32 %s18, %s25
      %p27 = scmp.eq.s32.totalorder %s26, 0
      %s29 = sadd.s32 %s28, 1
      %s30 = scalar_select %p27, %s28, %s29
      %p33 = pneg %p27
      %p34 = scmp.eq.s32.totalorder %s18, 1
      %p35 = por %p33, %p34
      %p36 = scmp.ne.s32.totalorder %s28, %s31
      %p37 = scmp.eq.s32.totalorder %s18, 0
      %p38 = por %p36, %p37
      %p39 = scmp.ne.s32.totalorder %s28, %s31
      %p40 = scmp.eq.s32.totalorder %s23, 1
      %p41 = por %p39, %p40
      %p42 = scmp.ne.s32.totalorder %s31, %s32
      %p43 = scmp.eq.s32.totalorder %s23, 0
      %p44 = por %p42, %p43
      %p45 = scmp.ne.s32.totalorder %s31, %s32
      %p46 = scmp.eq.s32.totalorder %s24, 1
      %p47 = por %p45, %p46
      %p49 = scmp.ne.s32.totalorder %s32, %s48
      %p50 = scmp.eq.s32.totalorder %s24, 0
      %p51 = por %p49, %p50
      %s53 = sadd.s32 %s52, 1
      %p56 = scmp.eq.s32.totalorder %s18, 1
      %p57 = scmp.ne.s32.totalorder %s52, %s54
      %p58 = scmp.eq.s32.totalorder %s18, 0
      %p59 = por %p57, %p58
      %p60 = scmp.ne.s32.totalorder %s52, %s54
      %p61 = scmp.eq.s32.totalorder %s23, 1
      %p62 = por %p60, %p61
      %p63 = scmp.ne.s32.totalorder %s54, %s55
      %p64 = scmp.eq.s32.totalorder %s23, 0
      %p65 = por %p63, %p64
      %p66 = scmp.ne.s32.totalorder %s54, %s55
      %p67 = scmp.eq.s32.totalorder %s24, 1
      %p68 = por %p66, %p67
      %p70 = scmp.ne.s32.totalorder %s55, %s69
      %p71 = scmp.eq.s32.totalorder %s24, 0
      %p72 = por %p70, %p71
      %s74 = sadd.s32 %s73, 1
      %p77 = scmp.eq.s32.totalorder %s18, 1
      %p78 = scmp.ne.s32.totalorder %s73, %s75
      %p79 = scmp.eq.s32.totalorder %s18, 0
      %p80 = por %p78, %p79
      %p81 = scmp.ne.s32.totalorder %s73, %s75
      %p82 = scmp.eq.s32.totalorder %s23, 1
      %p83 = por %p81, %p82
      %p84 = scmp.ne.s32.totalorder %s75, %s76
      %p85 = scmp.eq.s32.totalorder %s23, 0
      %p86 = por %p84, %p85
      %p87 = scmp.ne.s32.totalorder %s75, %s76
      %p88 = scmp.eq.s32.totalorder %s24, 1
      %p89 = por %p87, %p88
      %p91 = scmp.ne.s32.totalorder %s76, %s90
      %p92 = scmp.eq.s32.totalorder %s24, 0
      %p93 = por %p91, %p92
      %s95 = sadd.s32 %s94, 1
      %p98 = scmp.eq.s32.totalorder %s18, 1
      %p99 = scmp.ne.s32.totalorder %s94, %s96
      %p100 = scmp.eq.s32.totalorder %s18, 0
      %p101 = por %p99, %p100
      %p102 = scmp.ne.s32.totalorder %s94, %s96
      %p103 = scmp.eq.s32.totalorder %s23, 1
      %p104 = por %p102, %p103
      %p105 = scmp.ne.s32.totalorder %s96, %s97
      %p106 = scmp.eq.s32.totalorder %s23, 0
      %p107 = por %p105, %p106
      %p108 = scmp.ne.s32.totalorder %s96, %s97
      %p109 = scmp.eq.s32.totalorder %s24, 1
      %p110 = por %p108, %p109
      %p112 = scmp.ne.s32.totalorder %s97, %s111
      %p113 = scmp.eq.s32.totalorder %s24, 0
      %p114 = por %p112, %p113
      %s116 = sadd.s32 %s115, 1
      %p119 = scmp.eq.s32.totalorder %s18, 1
      %p120 = scmp.ne.s32.totalorder %s115, %s117
      %p121 = scmp.eq.s32.totalorder %s18, 0
      %p122 = por %p120, %p121
      %p123 = scmp.ne.s32.totalorder %s115, %s117
      %p124 = scmp.eq.s32.totalorder %s23, 1
      %p125 = por %p123, %p124
      %p126 = scmp.ne.s32.totalorder %s117, %s118
      %p127 = scmp.eq.s32.totalorder %s23, 0
      %p128 = por %p126, %p127
      %p129 = scmp.ne.s32.totalorder %s117, %s118
      %p130 = scmp.eq.s32.totalorder %s24, 1
      %p131 = por %p129, %p130
      %p133 = scmp.ne.s32.totalorder %s118, %s132
      %p134 = scmp.eq.s32.totalorder %s24, 0
      %p135 = por %p133, %p134
      %s136 = ssub.s32 %s18, %s25
      %p137 = scmp.eq.s32.totalorder %s136, 0
      %s139 = sadd.s32 %s138, 1
      %s140 = scalar_select %p137, %s138, %s139
      %p143 = pneg %p137
      %p144 = scmp.eq.s32.totalorder %s18, 1
      %p145 = por %p143, %p144
      %p146 = scmp.ne.s32.totalorder %s138, %s141
      %p147 = scmp.eq.s32.totalorder %s18, 0
      %p148 = por %p146, %p147
      %p149 = scmp.ne.s32.totalorder %s138, %s141
      %p150 = scmp.eq.s32.totalorder %s23, 1
      %p151 = por %p149, %p150
      %p152 = scmp.ne.s32.totalorder %s141, %s142
      %p153 = scmp.eq.s32.totalorder %s23, 0
      %p154 = por %p152, %p153
      %p155 = scmp.ne.s32.totalorder %s141, %s142
      %p156 = scmp.eq.s32.totalorder %s24, 1
      %p157 = por %p155, %p156
      %p159 = scmp.ne.s32.totalorder %s142, %s158
      %p160 = scmp.eq.s32.totalorder %s24, 0
      %p161 = por %p159, %p160
      %p162 = scmp.le.s32.totalorder 1, %s18
      %p163 = scmp.lt.s32.totalorder %s18, 3
      %p164 = pnand %p162, %p163
      %p165 = pneg %p164
      // Predicated region
      $region9: #{tpu_custom_call.1} parent=5 // pred_check
        _
      $region10: #{tpu_custom_call.1} parent=5 // pred_check_branch
        %167 = sbr.rel (%p164) target = $region12
      $region11: #{tpu_custom_call.1} parent=5 // pred_region
        %s168 = ssub.s32 %s18, 1
        // Predicated region
        $region13: #{tpu_custom_call.1} parent=11 // pred_check
          %p169 = pneg %p65
        $region14: #{tpu_custom_call.1} parent=11 // pred_check_branch
          %171 = sbr.rel (%p169) target = $region16
        $region15: #{tpu_custom_call.1} parent=11 // pred_region
          %s173 = ssub.s32 1024, 1024
          %174 = vsyncadd [#allocation6], %s173
          %s175 = sshll.u32 [#allocation5], 4
          %s176 = int_to_ptr.vmem [resolvable:$true] %s175
          %181 = dma.hbm_to_vmem [thread:$0]  %s1, 1024, %s176, [#allocation6], 64, 64, 4
        $region16: #{tpu_custom_call.1} parent=11 // pred_fallthru
          _
        // Predicated region
        $region17: #{tpu_custom_call.1} parent=11 // pred_check
          %p182 = pneg %p86
        $region18: #{tpu_custom_call.1} parent=11 // pred_check_branch
          %184 = sbr.rel (%p182) target = $region20
        $region19: #{tpu_custom_call.1} parent=11 // pred_region
          _
        $region20: #{tpu_custom_call.1} parent=11 // pred_fallthru
          _
        // Predicated region
        $region21: #{tpu_custom_call.1} parent=11 // pred_check
          %p185 = pneg %p107
        $region22: #{tpu_custom_call.1} parent=11 // pred_check_branch
          %187 = sbr.rel (%p185) target = $region24
        $region23: #{tpu_custom_call.1} parent=11 // pred_region
          _
        $region24: #{tpu_custom_call.1} parent=11 // pred_fallthru
          _
        // Predicated region
        $region25: #{tpu_custom_call.1} parent=11 // pred_check
          %p188 = pneg %p128
        $region26: #{tpu_custom_call.1} parent=11 // pred_check_branch
          %190 = sbr.rel (%p188) target = $region28
        $region27: #{tpu_custom_call.1} parent=11 // pred_region
          _
        $region28: #{tpu_custom_call.1} parent=11 // pred_fallthru
          _
      $region12: #{tpu_custom_call.1} parent=5 // pred_fallthru
        _
      %p191 = scmp.lt.s32.totalorder %s18, 2
      // Predicated region
      $region29: #{tpu_custom_call.1} parent=5 // pred_check
        %p192 = pneg %p191
      $region30: #{tpu_custom_call.1} parent=5 // pred_check_branch
        %194 = sbr.rel (%p192) target = $region32
      $region31: #{tpu_custom_call.1} parent=5 // pred_region
        // Predicated region
        $region33: #{tpu_custom_call.1} parent=31 // pred_check
          %p195 = pneg %p38
        $region34: #{tpu_custom_call.1} parent=31 // pred_check_branch
          %197 = sbr.rel (%p195) target = $region36
        $region35: #{tpu_custom_call.1} parent=31 // pred_region
          %s198 = sand.u32 %s28, 1
          %s199 = scalar_lea.sflag [#allocation3], %s198
          %s200 = sand.u32 %s28, 1
          %s201 = smul.addr %s200, 256
          %s202 = scalar_lea.vmem [#allocation2], %s201
          %s203 = smul.u32 32, %s18
          %s205 = ssub.s32 4096, 4096
          %206 = vsyncadd %s199, %s205
          %s207 = smul.addr %s203, 128
          %s208 = scalar_lea.hbm %s0, %s207
          %s209 = sshll.u32 %s202, 4
          %s210 = int_to_ptr.vmem [resolvable:$true] %s209
          %215 = dma.hbm_to_vmem [thread:$0]  %s208, 4096, %s210, %s199, 128, 128, 8
        $region36: #{tpu_custom_call.1} parent=31 // pred_fallthru
          _
      $region32: #{tpu_custom_call.1} parent=5 // pred_fallthru
        _
      %p216 = scmp.le.s32.totalorder 1, %s18
      %p217 = scmp.lt.s32.totalorder %s18, 3
      %p218 = pnand %p216, %p217
      %p219 = pneg %p218
      // Predicated region
      $region37: #{tpu_custom_call.1} parent=5 // pred_check
        _
      $region38: #{tpu_custom_call.1} parent=5 // pred_check_branch
        %221 = sbr.rel (%p218) target = $region40
      $region39: #{tpu_custom_call.1} parent=5 // pred_region
        %s222 = ssub.s32 %s18, 1
        %s223 = sand.u32 %s31, 1
        %s224 = scalar_lea.sflag [#allocation3], %s223
        %s225 = sand.u32 %s31, 1
        %s226 = smul.addr %s225, 256
        %s227 = scalar_lea.vmem [#allocation2], %s226
        // Predicated region
        $region41: #{tpu_custom_call.1} parent=39 // pred_check
          %p228 = pneg %p44
        $region42: #{tpu_custom_call.1} parent=39 // pred_check_branch
          %230 = sbr.rel (%p228) target = $region44
        $region43: #{tpu_custom_call.1} parent=39 // pred_region
          %231 = dma.done %s224, 4096
        $region44: #{tpu_custom_call.1} parent=39 // pred_fallthru
          _
        // Predicated region
        $region45: #{tpu_custom_call.1} parent=39 // pred_check
          %p232 = pneg %p65
        $region46: #{tpu_custom_call.1} parent=39 // pred_check_branch
          %234 = sbr.rel (%p232) target = $region48
        $region47: #{tpu_custom_call.1} parent=39 // pred_region
          %235 = dma.done [#allocation6], 1024
        $region48: #{tpu_custom_call.1} parent=39 // pred_fallthru
          _
        %s236 = sand.u32 %s31, 1
        %s237 = scalar_lea.sflag [#allocation3], %s236
        %s238 = sand.u32 %s31, 1
        %s239 = smul.addr %s238, 256
        %s240 = scalar_lea.vmem [#allocation2], %s239
        %p241 = pneg %p44
        %p242 = pneg %p41
        %p243 = pneg %p65
        %p244 = pneg %p62
        %p245 = pneg %p86
        %p246 = pneg %p83
        %p247 = pneg %p107
        %p248 = pneg %p104
        %p249 = pneg %p128
        %p250 = pneg %p125
        %p251 = pneg %p154
        %p252 = pneg %p151
        %s253 = sand.u32 %s141, 1
        %s254 = scalar_lea.sflag [#allocation4], %s253
        %s255 = sand.u32 %s141, 1
        %s256 = smul.addr %s255, 256
        %s257 = scalar_lea.vmem [#allocation7], %s256
        %s258 = smul.u32 32, %s23
        %s259 = smul.u32 32, %s23
        %v261 = vld [vmem:[%s227] sm:$0xff]
        %v262 = vld [vmem:[%s227 + $0x8] sm:$0xff]
        %v263 = vld [vmem:[%s227 + $0x10] sm:$0xff]
        %v264 = vld [vmem:[%s227 + $0x18] sm:$0xff]
        %v265 = vld [vmem:[%s227 + $0x20] sm:$0xff]
        %v266 = vld [vmem:[%s227 + $0x28] sm:$0xff]
        %v267 = vld [vmem:[%s227 + $0x30] sm:$0xff]
        %v268 = vld [vmem:[%s227 + $0x38] sm:$0xff]
        %v269 = vld [vmem:[%s227 + $0x40] sm:$0xff]
        %v270 = vld [vmem:[%s227 + $0x48] sm:$0xff]
        %v271 = vld [vmem:[%s227 + $0x50] sm:$0xff]
        %v272 = vld [vmem:[%s227 + $0x58] sm:$0xff]
        %v273 = vld [vmem:[%s227 + $0x60] sm:$0xff]
        %v274 = vld [vmem:[%s227 + $0x68] sm:$0xff]
        %v275 = vld [vmem:[%s227 + $0x70] sm:$0xff]
        %v276 = vld [vmem:[%s227 + $0x78] sm:$0xff]
        %v277 = vld [vmem:[%s227 + $0x80] sm:$0xff]
        %v278 = vld [vmem:[%s227 + $0x88] sm:$0xff]
        %v279 = vld [vmem:[%s227 + $0x90] sm:$0xff]
        %v280 = vld [vmem:[%s227 + $0x98] sm:$0xff]
        %v281 = vld [vmem:[%s227 + $0xa0] sm:$0xff]
        %v282 = vld [vmem:[%s227 + $0xa8] sm:$0xff]
        %v283 = vld [vmem:[%s227 + $0xb0] sm:$0xff]
        %v284 = vld [vmem:[%s227 + $0xb8] sm:$0xff]
        %v285 = vld [vmem:[%s227 + $0xc0] sm:$0xff]
        %v286 = vld [vmem:[%s227 + $0xc8] sm:$0xff]
        %v287 = vld [vmem:[%s227 + $0xd0] sm:$0xff]
        %v288 = vld [vmem:[%s227 + $0xd8] sm:$0xff]
        %v289 = vld [vmem:[%s227 + $0xe0] sm:$0xff]
        %v290 = vld [vmem:[%s227 + $0xe8] sm:$0xff]
        %v291 = vld [vmem:[%s227 + $0xf0] sm:$0xff]
        %v292 = vld [vmem:[%s227 + $0xf8] sm:$0xff]
        %293 = vadd.xlane.f32.xlu0 %v261
        %v294 = vpop.xlane.xlu0 %293
        %295 = vadd.xlane.f32.xlu0 %v262
        %v296 = vpop.xlane.xlu0 %295
        %297 = vadd.xlane.f32.xlu0 %v263
        %v298 = vpop.xlane.xlu0 %297
        %299 = vadd.xlane.f32.xlu0 %v264
        %v300 = vpop.xlane.xlu0 %299
        %301 = vadd.xlane.f32.xlu0 %v265
        %v302 = vpop.xlane.xlu0 %301
        %303 = vadd.xlane.f32.xlu0 %v266
        %v304 = vpop.xlane.xlu0 %303
        %305 = vadd.xlane.f32.xlu0 %v267
        %v306 = vpop.xlane.xlu0 %305
        %307 = vadd.xlane.f32.xlu0 %v268
        %v308 = vpop.xlane.xlu0 %307
        %309 = vadd.xlane.f32.xlu0 %v269
        %v310 = vpop.xlane.xlu0 %309
        %311 = vadd.xlane.f32.xlu0 %v270
        %v312 = vpop.xlane.xlu0 %311
        %313 = vadd.xlane.f32.xlu0 %v271
        %v314 = vpop.xlane.xlu0 %313
        %315 = vadd.xlane.f32.xlu0 %v272
        %v316 = vpop.xlane.xlu0 %315
        %317 = vadd.xlane.f32.xlu0 %v273
        %v318 = vpop.xlane.xlu0 %317
        %319 = vadd.xlane.f32.xlu0 %v274
        %v320 = vpop.xlane.xlu0 %319
        %321 = vadd.xlane.f32.xlu0 %v275
        %v322 = vpop.xlane.xlu0 %321
        %323 = vadd.xlane.f32.xlu0 %v276
        %v324 = vpop.xlane.xlu0 %323
        %325 = vadd.xlane.f32.xlu0 %v277
        %v326 = vpop.xlane.xlu0 %325
        %327 = vadd.xlane.f32.xlu0 %v278
        %v328 = vpop.xlane.xlu0 %327
        %329 = vadd.xlane.f32.xlu0 %v279
        %v330 = vpop.xlane.xlu0 %329
        %331 = vadd.xlane.f32.xlu0 %v280
        %v332 = vpop.xlane.xlu0 %331
        %333 = vadd.xlane.f32.xlu0 %v281
        %v334 = vpop.xlane.xlu0 %333
        %335 = vadd.xlane.f32.xlu0 %v282
        %v336 = vpop.xlane.xlu0 %335
        %337 = vadd.xlane.f32.xlu0 %v283
        %v338 = vpop.xlane.xlu0 %337
        %339 = vadd.xlane.f32.xlu0 %v284
        %v340 = vpop.xlane.xlu0 %339
        %341 = vadd.xlane.f32.xlu0 %v285
        %v342 = vpop.xlane.xlu0 %341
        %343 = vadd.xlane.f32.xlu0 %v286
        %v344 = vpop.xlane.xlu0 %343
        %345 = vadd.xlane.f32.xlu0 %v287
        %v346 = vpop.xlane.xlu0 %345
        %347 = vadd.xlane.f32.xlu0 %v288
        %v348 = vpop.xlane.xlu0 %347
        %349 = vadd.xlane.f32.xlu0 %v289
        %v350 = vpop.xlane.xlu0 %349
        %351 = vadd.xlane.f32.xlu0 %v290
        %v352 = vpop.xlane.xlu0 %351
        %353 = vadd.xlane.f32.xlu0 %v291
        %v354 = vpop.xlane.xlu0 %353
        %355 = vadd.xlane.f32.xlu0 %v292
        %v356 = vpop.xlane.xlu0 %355
        %v357 = vrcp.pop 128.0
        %v358 = vmul.f32 %v294, %v357
        %v359 = vmul.f32 %v296, %v357
        %v360 = vmul.f32 %v298, %v357
        %v361 = vmul.f32 %v300, %v357
        %v362 = vmul.f32 %v302, %v357
        %v363 = vmul.f32 %v304, %v357
        %v364 = vmul.f32 %v306, %v357
        %v365 = vmul.f32 %v308, %v357
        %v366 = vmul.f32 %v310, %v357
        %v367 = vmul.f32 %v312, %v357
        %v368 = vmul.f32 %v314, %v357
        %v369 = vmul.f32 %v316, %v357
        %v370 = vmul.f32 %v318, %v357
        %v371 = vmul.f32 %v320, %v357
        %v372 = vmul.f32 %v322, %v357
        %v373 = vmul.f32 %v324, %v357
        %v374 = vmul.f32 %v326, %v357
        %v375 = vmul.f32 %v328, %v357
        %v376 = vmul.f32 %v330, %v357
        %v377 = vmul.f32 %v332, %v357
        %v378 = vmul.f32 %v334, %v357
        %v379 = vmul.f32 %v336, %v357
        %v380 = vmul.f32 %v338, %v357
        %v381 = vmul.f32 %v340, %v357
        %v382 = vmul.f32 %v342, %v357
        %v383 = vmul.f32 %v344, %v357
        %v384 = vmul.f32 %v346, %v357
        %v385 = vmul.f32 %v348, %v357
        %v386 = vmul.f32 %v350, %v357
        %v387 = vmul.f32 %v352, %v357
        %v388 = vmul.f32 %v354, %v357
        %v389 = vmul.f32 %v356, %v357
        %v390 = vsub.f32 %v261, %v358
        %v391 = vsub.f32 %v262, %v359
        %v392 = vsub.f32 %v263, %v360
        %v393 = vsub.f32 %v264, %v361
        %v394 = vsub.f32 %v265, %v362
        %v395 = vsub.f32 %v266, %v363
        %v396 = vsub.f32 %v267, %v364
        %v397 = vsub.f32 %v268, %v365
        %v398 = vsub.f32 %v269, %v366
        %v399 = vsub.f32 %v270, %v367
        %v400 = vsub.f32 %v271, %v368
        %v401 = vsub.f32 %v272, %v369
        %v402 = vsub.f32 %v273, %v370
        %v403 = vsub.f32 %v274, %v371
        %v404 = vsub.f32 %v275, %v372
        %v405 = vsub.f32 %v276, %v373
        %v406 = vsub.f32 %v277, %v374
        %v407 = vsub.f32 %v278, %v375
        %v408 = vsub.f32 %v279, %v376
        %v409 = vsub.f32 %v280, %v377
        %v410 = vsub.f32 %v281, %v378
        %v411 = vsub.f32 %v282, %v379
        %v412 = vsub.f32 %v283, %v380
        %v413 = vsub.f32 %v284, %v381
        %v414 = vsub.f32 %v285, %v382
        %v415 = vsub.f32 %v286, %v383
        %v416 = vsub.f32 %v287, %v384
        %v417 = vsub.f32 %v288, %v385
        %v418 = vsub.f32 %v289, %v386
        %v419 = vsub.f32 %v290, %v387
        %v420 = vsub.f32 %v291, %v388
        %v421 = vsub.f32 %v292, %v389
        %v422 = vmul.f32 %v390, %v390
        %v423 = vmul.f32 %v391, %v391
        %v424 = vmul.f32 %v392, %v392
        %v425 = vmul.f32 %v393, %v393
        %v426 = vmul.f32 %v394, %v394
        %v427 = vmul.f32 %v395, %v395
        %v428 = vmul.f32 %v396, %v396
        %v429 = vmul.f32 %v397, %v397
        %v430 = vmul.f32 %v398, %v398
        %v431 = vmul.f32 %v399, %v399
        %v432 = vmul.f32 %v400, %v400
        %v433 = vmul.f32 %v401, %v401
        %v434 = vmul.f32 %v402, %v402
        %v435 = vmul.f32 %v403, %v403
        %v436 = vmul.f32 %v404, %v404
        %v437 = vmul.f32 %v405, %v405
        %v438 = vmul.f32 %v406, %v406
        %v439 = vmul.f32 %v407, %v407
        %v440 = vmul.f32 %v408, %v408
        %v441 = vmul.f32 %v409, %v409
        %v442 = vmul.f32 %v410, %v410
        %v443 = vmul.f32 %v411, %v411
        %v444 = vmul.f32 %v412, %v412
        %v445 = vmul.f32 %v413, %v413
        %v446 = vmul.f32 %v414, %v414
        %v447 = vmul.f32 %v415, %v415
        %v448 = vmul.f32 %v416, %v416
        %v449 = vmul.f32 %v417, %v417
        %v450 = vmul.f32 %v418, %v418
        %v451 = vmul.f32 %v419, %v419
        %v452 = vmul.f32 %v420, %v420
        %v453 = vmul.f32 %v421, %v421
        %454 = vadd.xlane.f32.xlu0 %v422
        %v455 = vpop.xlane.xlu0 %454
        %456 = vadd.xlane.f32.xlu0 %v423
        %v457 = vpop.xlane.xlu0 %456
        %458 = vadd.xlane.f32.xlu0 %v424
        %v459 = vpop.xlane.xlu0 %458
        %460 = vadd.xlane.f32.xlu0 %v425
        %v461 = vpop.xlane.xlu0 %460
        %462 = vadd.xlane.f32.xlu0 %v426
        %v463 = vpop.xlane.xlu0 %462
        %464 = vadd.xlane.f32.xlu0 %v427
        %v465 = vpop.xlane.xlu0 %464
        %466 = vadd.xlane.f32.xlu0 %v428
        %v467 = vpop.xlane.xlu0 %466
        %468 = vadd.xlane.f32.xlu0 %v429
        %v469 = vpop.xlane.xlu0 %468
        %470 = vadd.xlane.f32.xlu0 %v430
        %v471 = vpop.xlane.xlu0 %470
        %472 = vadd.xlane.f32.xlu0 %v431
        %v473 = vpop.xlane.xlu0 %472
        %474 = vadd.xlane.f32.xlu0 %v432
        %v475 = vpop.xlane.xlu0 %474
        %476 = vadd.xlane.f32.xlu0 %v433
        %v477 = vpop.xlane.xlu0 %476
        %478 = vadd.xlane.f32.xlu0 %v434
        %v479 = vpop.xlane.xlu0 %478
        %480 = vadd.xlane.f32.xlu0 %v435
        %v481 = vpop.xlane.xlu0 %480
        %482 = vadd.xlane.f32.xlu0 %v436
        %v483 = vpop.xlane.xlu0 %482
        %484 = vadd.xlane.f32.xlu0 %v437
        %v485 = vpop.xlane.xlu0 %484
        %486 = vadd.xlane.f32.xlu0 %v438
        %v487 = vpop.xlane.xlu0 %486
        %488 = vadd.xlane.f32.xlu0 %v439
        %v489 = vpop.xlane.xlu0 %488
        %490 = vadd.xlane.f32.xlu0 %v440
        %v491 = vpop.xlane.xlu0 %490
        %492 = vadd.xlane.f32.xlu0 %v441
        %v493 = vpop.xlane.xlu0 %492
        %494 = vadd.xlane.f32.xlu0 %v442
        %v495 = vpop.xlane.xlu0 %494
        %496 = vadd.xlane.f32.xlu0 %v443
        %v497 = vpop.xlane.xlu0 %496
        %498 = vadd.xlane.f32.xlu0 %v444
        %v499 = vpop.xlane.xlu0 %498
        %500 = vadd.xlane.f32.xlu0 %v445
        %v501 = vpop.xlane.xlu0 %500
        %502 = vadd.xlane.f32.xlu0 %v446
        %v503 = vpop.xlane.xlu0 %502
        %504 = vadd.xlane.f32.xlu0 %v447
        %v505 = vpop.xlane.xlu0 %504
        %506 = vadd.xlane.f32.xlu0 %v448
        %v507 = vpop.xlane.xlu0 %506
        %508 = vadd.xlane.f32.xlu0 %v449
        %v509 = vpop.xlane.xlu0 %508
        %510 = vadd.xlane.f32.xlu0 %v450
        %v511 = vpop.xlane.xlu0 %510
        %512 = vadd.xlane.f32.xlu0 %v451
        %v513 = vpop.xlane.xlu0 %512
        %514 = vadd.xlane.f32.xlu0 %v452
        %v515 = vpop.xlane.xlu0 %514
        %516 = vadd.xlane.f32.xlu0 %v453
        %v517 = vpop.xlane.xlu0 %516
        %v518 = vmul.f32 %v455, 0.007874016
        %v519 = vmul.f32 %v457, 0.007874016
        %v520 = vmul.f32 %v459, 0.007874016
        %v521 = vmul.f32 %v461, 0.007874016
        %v522 = vmul.f32 %v463, 0.007874016
        %v523 = vmul.f32 %v465, 0.007874016
        %v524 = vmul.f32 %v467, 0.007874016
        %v525 = vmul.f32 %v469, 0.007874016
        %v526 = vmul.f32 %v471, 0.007874016
        %v527 = vmul.f32 %v473, 0.007874016
        %v528 = vmul.f32 %v475, 0.007874016
        %v529 = vmul.f32 %v477, 0.007874016
        %v530 = vmul.f32 %v479, 0.007874016
        %v531 = vmul.f32 %v481, 0.007874016
        %v532 = vmul.f32 %v483, 0.007874016
        %v533 = vmul.f32 %v485, 0.007874016
        %v534 = vmul.f32 %v487, 0.007874016
        %v535 = vmul.f32 %v489, 0.007874016
        %v536 = vmul.f32 %v491, 0.007874016
        %v537 = vmul.f32 %v493, 0.007874016
        %v538 = vmul.f32 %v495, 0.007874016
        %v539 = vmul.f32 %v497, 0.007874016
        %v540 = vmul.f32 %v499, 0.007874016
        %v541 = vmul.f32 %v501, 0.007874016
        %v542 = vmul.f32 %v503, 0.007874016
        %v543 = vmul.f32 %v505, 0.007874016
        %v544 = vmul.f32 %v507, 0.007874016
        %v545 = vmul.f32 %v509, 0.007874016
        %v546 = vmul.f32 %v511, 0.007874016
        %v547 = vmul.f32 %v513, 0.007874016
        %v548 = vmul.f32 %v515, 0.007874016
        %v549 = vmul.f32 %v517, 0.007874016
        %v550 = vrsqrt.pop %v518
        %v551 = vmul.f32 %v518, %v550
        %vm552 = vcmp.eq.f32.partialorder %v518, inf
        %v553 = vsel %vm552, %v518, %v551
        %vm554 = vcmp.eq.f32.partialorder %v518, 0.0
        %v555 = vand.u32 %v518, 2147483648
        %v556 = vsel %vm554, %v555, %v553
        %v557 = vrsqrt.pop %v519
        %v558 = vmul.f32 %v519, %v557
        %vm559 = vcmp.eq.f32.partialorder %v519, inf
        %v560 = vsel %vm559, %v519, %v558
        %vm561 = vcmp.eq.f32.partialorder %v519, 0.0
        %v562 = vand.u32 %v519, 2147483648
        %v563 = vsel %vm561, %v562, %v560
        %v564 = vrsqrt.pop %v520
        %v565 = vmul.f32 %v520, %v564
        %vm566 = vcmp.eq.f32.partialorder %v520, inf
        %v567 = vsel %vm566, %v520, %v565
        %vm568 = vcmp.eq.f32.partialorder %v520, 0.0
        %v569 = vand.u32 %v520, 2147483648
        %v570 = vsel %vm568, %v569, %v567
        %v571 = vrsqrt.pop %v521
        %v572 = vmul.f32 %v521, %v571
        %vm573 = vcmp.eq.f32.partialorder %v521, inf
        %v574 = vsel %vm573, %v521, %v572
        %vm575 = vcmp.eq.f32.partialorder %v521, 0.0
        %v576 = vand.u32 %v521, 2147483648
        %v577 = vsel %vm575, %v576, %v574
        %v578 = vrsqrt.pop %v522
        %v579 = vmul.f32 %v522, %v578
        %vm580 = vcmp.eq.f32.partialorder %v522, inf
        %v581 = vsel %vm580, %v522, %v579
        %vm582 = vcmp.eq.f32.partialorder %v522, 0.0
        %v583 = vand.u32 %v522, 2147483648
        %v584 = vsel %vm582, %v583, %v581
        %v585 = vrsqrt.pop %v523
        %v586 = vmul.f32 %v523, %v585
        %vm587 = vcmp.eq.f32.partialorder %v523, inf
        %v588 = vsel %vm587, %v523, %v586
        %vm589 = vcmp.eq.f32.partialorder %v523, 0.0
        %v590 = vand.u32 %v523, 2147483648
        %v591 = vsel %vm589, %v590, %v588
        %v592 = vrsqrt.pop %v524
        %v593 = vmul.f32 %v524, %v592
        %vm594 = vcmp.eq.f32.partialorder %v524, inf
        %v595 = vsel %vm594, %v524, %v593
        %vm596 = vcmp.eq.f32.partialorder %v524, 0.0
        %v597 = vand.u32 %v524, 2147483648
        %v598 = vsel %vm596, %v597, %v595
        %v599 = vrsqrt.pop %v525
        %v600 = vmul.f32 %v525, %v599
        %vm601 = vcmp.eq.f32.partialorder %v525, inf
        %v602 = vsel %vm601, %v525, %v600
        %vm603 = vcmp.eq.f32.partialorder %v525, 0.0
        %v604 = vand.u32 %v525, 2147483648
        %v605 = vsel %vm603, %v604, %v602
        %v606 = vrsqrt.pop %v526
        %v607 = vmul.f32 %v526, %v606
        %vm608 = vcmp.eq.f32.partialorder %v526, inf
        %v609 = vsel %vm608, %v526, %v607
        %vm610 = vcmp.eq.f32.partialorder %v526, 0.0
        %v611 = vand.u32 %v526, 2147483648
        %v612 = vsel %vm610, %v611, %v609
        %v613 = vrsqrt.pop %v527
        %v614 = vmul.f32 %v527, %v613
        %vm615 = vcmp.eq.f32.partialorder %v527, inf
        %v616 = vsel %vm615, %v527, %v614
        %vm617 = vcmp.eq.f32.partialorder %v527, 0.0
        %v618 = vand.u32 %v527, 2147483648
        %v619 = vsel %vm617, %v618, %v616
        %v620 = vrsqrt.pop %v528
        %v621 = vmul.f32 %v528, %v620
        %vm622 = vcmp.eq.f32.partialorder %v528, inf
        %v623 = vsel %vm622, %v528, %v621
        %vm624 = vcmp.eq.f32.partialorder %v528, 0.0
        %v625 = vand.u32 %v528, 2147483648
        %v626 = vsel %vm624, %v625, %v623
        %v627 = vrsqrt.pop %v529
        %v628 = vmul.f32 %v529, %v627
        %vm629 = vcmp.eq.f32.partialorder %v529, inf
        %v630 = vsel %vm629, %v529, %v628
        %vm631 = vcmp.eq.f32.partialorder %v529, 0.0
        %v632 = vand.u32 %v529, 2147483648
        %v633 = vsel %vm631, %v632, %v630
        %v634 = vrsqrt.pop %v530
        %v635 = vmul.f32 %v530, %v634
        %vm636 = vcmp.eq.f32.partialorder %v530, inf
        %v637 = vsel %vm636, %v530, %v635
        %vm638 = vcmp.eq.f32.partialorder %v530, 0.0
        %v639 = vand.u32 %v530, 2147483648
        %v640 = vsel %vm638, %v639, %v637
        %v641 = vrsqrt.pop %v531
        %v642 = vmul.f32 %v531, %v641
        %vm643 = vcmp.eq.f32.partialorder %v531, inf
        %v644 = vsel %vm643, %v531, %v642
        %vm645 = vcmp.eq.f32.partialorder %v531, 0.0
        %v646 = vand.u32 %v531, 2147483648
        %v647 = vsel %vm645, %v646, %v644
        %v648 = vrsqrt.pop %v532
        %v649 = vmul.f32 %v532, %v648
        %vm650 = vcmp.eq.f32.partialorder %v532, inf
        %v651 = vsel %vm650, %v532, %v649
        %vm652 = vcmp.eq.f32.partialorder %v532, 0.0
        %v653 = vand.u32 %v532, 2147483648
        %v654 = vsel %vm652, %v653, %v651
        %v655 = vrsqrt.pop %v533
        %v656 = vmul.f32 %v533, %v655
        %vm657 = vcmp.eq.f32.partialorder %v533, inf
        %v658 = vsel %vm657, %v533, %v656
        %vm659 = vcmp.eq.f32.partialorder %v533, 0.0
        %v660 = vand.u32 %v533, 2147483648
        %v661 = vsel %vm659, %v660, %v658
        %v662 = vrsqrt.pop %v534
        %v663 = vmul.f32 %v534, %v662
        %vm664 = vcmp.eq.f32.partialorder %v534, inf
        %v665 = vsel %vm664, %v534, %v663
        %vm666 = vcmp.eq.f32.partialorder %v534, 0.0
        %v667 = vand.u32 %v534, 2147483648
        %v668 = vsel %vm666, %v667, %v665
        %v669 = vrsqrt.pop %v535
        %v670 = vmul.f32 %v535, %v669
        %vm671 = vcmp.eq.f32.partialorder %v535, inf
        %v672 = vsel %vm671, %v535, %v670
        %vm673 = vcmp.eq.f32.partialorder %v535, 0.0
        %v674 = vand.u32 %v535, 2147483648
        %v675 = vsel %vm673, %v674, %v672
        %v676 = vrsqrt.pop %v536
        %v677 = vmul.f32 %v536, %v676
        %vm678 = vcmp.eq.f32.partialorder %v536, inf
        %v679 = vsel %vm678, %v536, %v677
        %vm680 = vcmp.eq.f32.partialorder %v536, 0.0
        %v681 = vand.u32 %v536, 2147483648
        %v682 = vsel %vm680, %v681, %v679
        %v683 = vrsqrt.pop %v537
        %v684 = vmul.f32 %v537, %v683
        %vm685 = vcmp.eq.f32.partialorder %v537, inf
        %v686 = vsel %vm685, %v537, %v684
        %vm687 = vcmp.eq.f32.partialorder %v537, 0.0
        %v688 = vand.u32 %v537, 2147483648
        %v689 = vsel %vm687, %v688, %v686
        %v690 = vrsqrt.pop %v538
        %v691 = vmul.f32 %v538, %v690
        %vm692 = vcmp.eq.f32.partialorder %v538, inf
        %v693 = vsel %vm692, %v538, %v691
        %vm694 = vcmp.eq.f32.partialorder %v538, 0.0
        %v695 = vand.u32 %v538, 2147483648
        %v696 = vsel %vm694, %v695, %v693
        %v697 = vrsqrt.pop %v539
        %v698 = vmul.f32 %v539, %v697
        %vm699 = vcmp.eq.f32.partialorder %v539, inf
        %v700 = vsel %vm699, %v539, %v698
        %vm701 = vcmp.eq.f32.partialorder %v539, 0.0
        %v702 = vand.u32 %v539, 2147483648
        %v703 = vsel %vm701, %v702, %v700
        %v704 = vrsqrt.pop %v540
        %v705 = vmul.f32 %v540, %v704
        %vm706 = vcmp.eq.f32.partialorder %v540, inf
        %v707 = vsel %vm706, %v540, %v705
        %vm708 = vcmp.eq.f32.partialorder %v540, 0.0
        %v709 = vand.u32 %v540, 2147483648
        %v710 = vsel %vm708, %v709, %v707
        %v711 = vrsqrt.pop %v541
        %v712 = vmul.f32 %v541, %v711
        %vm713 = vcmp.eq.f32.partialorder %v541, inf
        %v714 = vsel %vm713, %v541, %v712
        %vm715 = vcmp.eq.f32.partialorder %v541, 0.0
        %v716 = vand.u32 %v541, 2147483648
        %v717 = vsel %vm715, %v716, %v714
        %v718 = vrsqrt.pop %v542
        %v719 = vmul.f32 %v542, %v718
        %vm720 = vcmp.eq.f32.partialorder %v542, inf
        %v721 = vsel %vm720, %v542, %v719
        %vm722 = vcmp.eq.f32.partialorder %v542, 0.0
        %v723 = vand.u32 %v542, 2147483648
        %v724 = vsel %vm722, %v723, %v721
        %v725 = vrsqrt.pop %v543
        %v726 = vmul.f32 %v543, %v725
        %vm727 = vcmp.eq.f32.partialorder %v543, inf
        %v728 = vsel %vm727, %v543, %v726
        %vm729 = vcmp.eq.f32.partialorder %v543, 0.0
        %v730 = vand.u32 %v543, 2147483648
        %v731 = vsel %vm729, %v730, %v728
        %v732 = vrsqrt.pop %v544
        %v733 = vmul.f32 %v544, %v732
        %vm734 = vcmp.eq.f32.partialorder %v544, inf
        %v735 = vsel %vm734, %v544, %v733
        %vm736 = vcmp.eq.f32.partialorder %v544, 0.0
        %v737 = vand.u32 %v544, 2147483648
        %v738 = vsel %vm736, %v737, %v735
        %v739 = vrsqrt.pop %v545
        %v740 = vmul.f32 %v545, %v739
        %vm741 = vcmp.eq.f32.partialorder %v545, inf
        %v742 = vsel %vm741, %v545, %v740
        %vm743 = vcmp.eq.f32.partialorder %v545, 0.0
        %v744 = vand.u32 %v545, 2147483648
        %v745 = vsel %vm743, %v744, %v742
        %v746 = vrsqrt.pop %v546
        %v747 = vmul.f32 %v546, %v746
        %vm748 = vcmp.eq.f32.partialorder %v546, inf
        %v749 = vsel %vm748, %v546, %v747
        %vm750 = vcmp.eq.f32.partialorder %v546, 0.0
        %v751 = vand.u32 %v546, 2147483648
        %v752 = vsel %vm750, %v751, %v749
        %v753 = vrsqrt.pop %v547
        %v754 = vmul.f32 %v547, %v753
        %vm755 = vcmp.eq.f32.partialorder %v547, inf
        %v756 = vsel %vm755, %v547, %v754
        %vm757 = vcmp.eq.f32.partialorder %v547, 0.0
        %v758 = vand.u32 %v547, 2147483648
        %v759 = vsel %vm757, %v758, %v756
        %v760 = vrsqrt.pop %v548
        %v761 = vmul.f32 %v548, %v760
        %vm762 = vcmp.eq.f32.partialorder %v548, inf
        %v763 = vsel %vm762, %v548, %v761
        %vm764 = vcmp.eq.f32.partialorder %v548, 0.0
        %v765 = vand.u32 %v548, 2147483648
        %v766 = vsel %vm764, %v765, %v763
        %v767 = vrsqrt.pop %v549
        %v768 = vmul.f32 %v549, %v767
        %vm769 = vcmp.eq.f32.partialorder %v549, inf
        %v770 = vsel %vm769, %v549, %v768
        %vm771 = vcmp.eq.f32.partialorder %v549, 0.0
        %v772 = vand.u32 %v549, 2147483648
        %v773 = vsel %vm771, %v772, %v770
        %v774 = vadd.f32 %v556, 1e-06
        %v775 = vadd.f32 %v563, 1e-06
        %v776 = vadd.f32 %v570, 1e-06
        %v777 = vadd.f32 %v577, 1e-06
        %v778 = vadd.f32 %v584, 1e-06
        %v779 = vadd.f32 %v591, 1e-06
        %v780 = vadd.f32 %v598, 1e-06
        %v781 = vadd.f32 %v605, 1e-06
        %v782 = vadd.f32 %v612, 1e-06
        %v783 = vadd.f32 %v619, 1e-06
        %v784 = vadd.f32 %v626, 1e-06
        %v785 = vadd.f32 %v633, 1e-06
        %v786 = vadd.f32 %v640, 1e-06
        %v787 = vadd.f32 %v647, 1e-06
        %v788 = vadd.f32 %v654, 1e-06
        %v789 = vadd.f32 %v661, 1e-06
        %v790 = vadd.f32 %v668, 1e-06
        %v791 = vadd.f32 %v675, 1e-06
        %v792 = vadd.f32 %v682, 1e-06
        %v793 = vadd.f32 %v689, 1e-06
        %v794 = vadd.f32 %v696, 1e-06
        %v795 = vadd.f32 %v703, 1e-06
        %v796 = vadd.f32 %v710, 1e-06
        %v797 = vadd.f32 %v717, 1e-06
        %v798 = vadd.f32 %v724, 1e-06
        %v799 = vadd.f32 %v731, 1e-06
        %v800 = vadd.f32 %v738, 1e-06
        %v801 = vadd.f32 %v745, 1e-06
        %v802 = vadd.f32 %v752, 1e-06
        %v803 = vadd.f32 %v759, 1e-06
        %v804 = vadd.f32 %v766, 1e-06
        %v805 = vadd.f32 %v773, 1e-06
        %v806 = vrcp.pop %v774
        %v807 = vrcp.pop %v775
        %v808 = vrcp.pop %v776
        %v809 = vrcp.pop %v777
        %v810 = vrcp.pop %v778
        %v811 = vrcp.pop %v779
        %v812 = vrcp.pop %v780
        %v813 = vrcp.pop %v781
        %v814 = vrcp.pop %v782
        %v815 = vrcp.pop %v783
        %v816 = vrcp.pop %v784
        %v817 = vrcp.pop %v785
        %v818 = vrcp.pop %v786
        %v819 = vrcp.pop %v787
        %v820 = vrcp.pop %v788
        %v821 = vrcp.pop %v789
        %v822 = vrcp.pop %v790
        %v823 = vrcp.pop %v791
        %v824 = vrcp.pop %v792
        %v825 = vrcp.pop %v793
        %v826 = vrcp.pop %v794
        %v827 = vrcp.pop %v795
        %v828 = vrcp.pop %v796
        %v829 = vrcp.pop %v797
        %v830 = vrcp.pop %v798
        %v831 = vrcp.pop %v799
        %v832 = vrcp.pop %v800
        %v833 = vrcp.pop %v801
        %v834 = vrcp.pop %v802
        %v835 = vrcp.pop %v803
        %v836 = vrcp.pop %v804
        %v837 = vrcp.pop %v805
        %v838 = vld [vmem:[%s3] sm:$0x1]
        %v840 = vlaneseq
        %v841 = vshrl.u32 %v840, 7
        %v842 = vsub.s32 0, %v841
        %v843 = vrot.slane %v838, %v842
        %v845 = vmul.f32 %v843, %v390
        %v846 = vmul.f32 %v843, %v391
        %v847 = vmul.f32 %v843, %v392
        %v848 = vmul.f32 %v843, %v393
        %v849 = vmul.f32 %v843, %v394
        %v850 = vmul.f32 %v843, %v395
        %v851 = vmul.f32 %v843, %v396
        %v852 = vmul.f32 %v843, %v397
        %v853 = vmul.f32 %v843, %v398
        %v854 = vmul.f32 %v843, %v399
        %v855 = vmul.f32 %v843, %v400
        %v856 = vmul.f32 %v843, %v401
        %v857 = vmul.f32 %v843, %v402
        %v858 = vmul.f32 %v843, %v403
        %v859 = vmul.f32 %v843, %v404
        %v860 = vmul.f32 %v843, %v405
        %v861 = vmul.f32 %v843, %v406
        %v862 = vmul.f32 %v843, %v407
        %v863 = vmul.f32 %v843, %v408
        %v864 = vmul.f32 %v843, %v409
        %v865 = vmul.f32 %v843, %v410
        %v866 = vmul.f32 %v843, %v411
        %v867 = vmul.f32 %v843, %v412
        %v868 = vmul.f32 %v843, %v413
        %v869 = vmul.f32 %v843, %v414
        %v870 = vmul.f32 %v843, %v415
        %v871 = vmul.f32 %v843, %v416
        %v872 = vmul.f32 %v843, %v417
        %v873 = vmul.f32 %v843, %v418
        %v874 = vmul.f32 %v843, %v419
        %v875 = vmul.f32 %v843, %v420
        %v876 = vmul.f32 %v843, %v421
        %v877 = vmul.f32 %v845, %v806
        %v878 = vmul.f32 %v846, %v807
        %v879 = vmul.f32 %v847, %v808
        %v880 = vmul.f32 %v848, %v809
        %v881 = vmul.f32 %v849, %v810
        %v882 = vmul.f32 %v850, %v811
        %v883 = vmul.f32 %v851, %v812
        %v884 = vmul.f32 %v852, %v813
        %v885 = vmul.f32 %v853, %v814
        %v886 = vmul.f32 %v854, %v815
        %v887 = vmul.f32 %v855, %v816
        %v888 = vmul.f32 %v856, %v817
        %v889 = vmul.f32 %v857, %v818
        %v890 = vmul.f32 %v858, %v819
        %v891 = vmul.f32 %v859, %v820
        %v892 = vmul.f32 %v860, %v821
        %v893 = vmul.f32 %v861, %v822
        %v894 = vmul.f32 %v862, %v823
        %v895 = vmul.f32 %v863, %v824
        %v896 = vmul.f32 %v864, %v825
        %v897 = vmul.f32 %v865, %v826
        %v898 = vmul.f32 %v866, %v827
        %v899 = vmul.f32 %v867, %v828
        %v900 = vmul.f32 %v868, %v829
        %v901 = vmul.f32 %v869, %v830
        %v902 = vmul.f32 %v870, %v831
        %v903 = vmul.f32 %v871, %v832
        %v904 = vmul.f32 %v872, %v833
        %v905 = vmul.f32 %v873, %v834
        %v906 = vmul.f32 %v874, %v835
        %v907 = vmul.f32 %v875, %v836
        %v908 = vmul.f32 %v876, %v837
        %v909 = vld [vmem:[%s4] sm:$0x1]
        %v911 = vlaneseq
        %v912 = vshrl.u32 %v911, 7
        %v913 = vsub.s32 0, %v912
        %v914 = vrot.slane %v909, %v913
        %v916 = vadd.f32 %v877, %v914
        %v917 = vadd.f32 %v878, %v914
        %v918 = vadd.f32 %v879, %v914
        %v919 = vadd.f32 %v880, %v914
        %v920 = vadd.f32 %v881, %v914
        %v921 = vadd.f32 %v882, %v914
        %v922 = vadd.f32 %v883, %v914
        %v923 = vadd.f32 %v884, %v914
        %v924 = vadd.f32 %v885, %v914
        %v925 = vadd.f32 %v886, %v914
        %v926 = vadd.f32 %v887, %v914
        %v927 = vadd.f32 %v888, %v914
        %v928 = vadd.f32 %v889, %v914
        %v929 = vadd.f32 %v890, %v914
        %v930 = vadd.f32 %v891, %v914
        %v931 = vadd.f32 %v892, %v914
        %v932 = vadd.f32 %v893, %v914
        %v933 = vadd.f32 %v894, %v914
        %v934 = vadd.f32 %v895, %v914
        %v935 = vadd.f32 %v896, %v914
        %v936 = vadd.f32 %v897, %v914
        %v937 = vadd.f32 %v898, %v914
        %v938 = vadd.f32 %v899, %v914
        %v939 = vadd.f32 %v900, %v914
        %v940 = vadd.f32 %v901, %v914
        %v941 = vadd.f32 %v902, %v914
        %v942 = vadd.f32 %v903, %v914
        %v943 = vadd.f32 %v904, %v914
        %v944 = vadd.f32 %v905, %v914
        %v945 = vadd.f32 %v906, %v914
        %v946 = vadd.f32 %v907, %v914
        %v947 = vadd.f32 %v908, %v914
        %v948 = vpack.c.bf16 %v917, %v916
        %v949 = vpack.c.bf16 %v919, %v918
        %v950 = vpack.c.bf16 %v921, %v920
        %v951 = vpack.c.bf16 %v923, %v922
        %v952 = vpack.c.bf16 %v925, %v924
        %v953 = vpack.c.bf16 %v927, %v926
        %v954 = vpack.c.bf16 %v929, %v928
        %v955 = vpack.c.bf16 %v931, %v930
        %v956 = vpack.c.bf16 %v933, %v932
        %v957 = vpack.c.bf16 %v935, %v934
        %v958 = vpack.c.bf16 %v937, %v936
        %v959 = vpack.c.bf16 %v939, %v938
        %v960 = vpack.c.bf16 %v941, %v940
        %v961 = vpack.c.bf16 %v943, %v942
        %v962 = vpack.c.bf16 %v945, %v944
        %v963 = vpack.c.bf16 %v947, %v946
        %v964 = vld [vmem:[#allocation5] sm:$0xf]
        %v965 = vld [vmem:[#allocation5 + $0x4] sm:$0xf]
        %v966 = vld [vmem:[#allocation5 + $0x8] sm:$0xf]
        %v967 = vld [vmem:[#allocation5 + $0xc] sm:$0xf]
        %v968 = vld [vmem:[#allocation5 + $0x10] sm:$0xf]
        %v969 = vld [vmem:[#allocation5 + $0x14] sm:$0xf]
        %v970 = vld [vmem:[#allocation5 + $0x18] sm:$0xf]
        %v971 = vld [vmem:[#allocation5 + $0x1c] sm:$0xf]
        %v972 = vld [vmem:[#allocation5 + $0x20] sm:$0xf]
        %v973 = vld [vmem:[#allocation5 + $0x24] sm:$0xf]
        %v974 = vld [vmem:[#allocation5 + $0x28] sm:$0xf]
        %v975 = vld [vmem:[#allocation5 + $0x2c] sm:$0xf]
        %v976 = vld [vmem:[#allocation5 + $0x30] sm:$0xf]
        %v977 = vld [vmem:[#allocation5 + $0x34] sm:$0xf]
        %v978 = vld [vmem:[#allocation5 + $0x38] sm:$0xf]
        %v979 = vld [vmem:[#allocation5 + $0x3c] sm:$0xf]
        %v980 = vld [vmem:[%s2] sm:$0x1]
        %v982 = vlaneseq
        %v983 = vshrl.u32 %v982, 7
        %v984 = vsub.s32 0, %v983
        %v985 = vrot.slane %v980, %v984
        %v1003 = vunpack.c.l.b16 %v964
        %v1004 = vunpack.c.l.b16 %v965
        %v1005 = vunpack.c.l.b16 %v966
        %v1006 = vunpack.c.l.b16 %v967
        %v1007 = vunpack.c.l.b16 %v968
        %v1008 = vunpack.c.l.b16 %v969
        %v1009 = vunpack.c.l.b16 %v970
        %v1010 = vunpack.c.l.b16 %v971
        %v1011 = vunpack.c.l.b16 %v972
        %v1012 = vunpack.c.l.b16 %v973
        %v1013 = vunpack.c.l.b16 %v974
        %v1014 = vunpack.c.l.b16 %v975
        %v1015 = vunpack.c.l.b16 %v976
        %v1016 = vunpack.c.l.b16 %v977
        %v1017 = vunpack.c.l.b16 %v978
        %v1018 = vunpack.c.l.b16 %v979
        %v1019 = vpack.c.b16 %v1004, %v1003
        %v1020 = vpack.c.b16 %v1006, %v1005
        %v1021 = vpack.c.b16 %v1008, %v1007
        %v1022 = vpack.c.b16 %v1010, %v1009
        %v1023 = vpack.c.b16 %v1012, %v1011
        %v1024 = vpack.c.b16 %v1014, %v1013
        %v1025 = vpack.c.b16 %v1016, %v1015
        %v1026 = vpack.c.b16 %v1018, %v1017
        %1035 = vmatprep.subr.bf16.mxu0 0
        %1036 = vmatpush1.bf16.msra.mxu0 %v1026
        %1037 = vmatprep.subr.bf16.mxu0 0
        %1038 = vmatpush1.bf16.msra.mxu0 %v1025
        %1039 = vmatprep.subr.bf16.mxu0 0
        %1040 = vmatpush1.bf16.msra.mxu0 %v1024
        %1041 = vmatprep.subr.bf16.mxu0 0
        %1042 = vmatpush1.bf16.msra.mxu0 %v1023
        %1043 = vmatprep.subr.bf16.mxu0 0
        %1044 = vmatpush1.bf16.msra.mxu0 %v1022
        %1045 = vmatprep.subr.bf16.mxu0 0
        %1046 = vmatpush1.bf16.msra.mxu0 %v1021
        %1047 = vmatprep.subr.bf16.mxu0 0
        %1048 = vmatpush1.bf16.msra.mxu0 %v1020
        %1049 = vmatprep.subr.bf16.mxu0 0
        %1050 = vmatpush1.bf16.msra.mxu0 %v1019
        %1051 = vmatprep.subr.bf16.mxu0 0
        %1052 = vmatpush2.bf16.msra.mxu0 0
        %1053 = vmatprep.subr.bf16.mxu0 0
        %1054 = vmatpush2.bf16.msra.mxu0 0
        %1055 = vmatprep.subr.bf16.mxu0 0
        %1056 = vmatpush2.bf16.msra.mxu0 0
        %1057 = vmatprep.subr.bf16.mxu0 0
        %1058 = vmatpush2.bf16.msra.mxu0 0
        %1059 = vmatprep.subr.bf16.mxu0 0
        %1060 = vmatpush2.bf16.msra.mxu0 0
        %1061 = vmatprep.subr.bf16.mxu0 0
        %1062 = vmatpush2.bf16.msra.mxu0 0
        %1063 = vmatprep.subr.bf16.mxu0 0
        %1064 = vmatpush2.bf16.msra.mxu0 0
        %1065 = vmatprep.subr.bf16.mxu0 0
        %1066 = vmatpush2.bf16.msra.mxu0 0
        %1067 = vmatprep.mubr.bf16.mxu0 0
        %1068 = vmatmul.mubr.bf16.gmra.mxu0 %v948
        %v1069 = vpop.f32.mrf.mxu0
        %v1070 = vadd.f32 %v985, %v1069
        %v1071 = vpop.f32.mrf.mxu0
        %v1072 = vpop.f32.mrf.mxu0
        %v1073 = vadd.f32 %v985, %v1072
        %v1074 = vpop.f32.mrf.mxu0
        %1075 = vmatprep.mubr.bf16.mxu0 0
        %1076 = vmatmul.mubr.bf16.gmra.mxu0 %v949
        %v1077 = vpop.f32.mrf.mxu0
        %v1078 = vadd.f32 %v985, %v1077
        %v1079 = vpop.f32.mrf.mxu0
        %v1080 = vpop.f32.mrf.mxu0
        %v1081 = vadd.f32 %v985, %v1080
        %v1082 = vpop.f32.mrf.mxu0
        %1083 = vmatprep.mubr.bf16.mxu0 0
        %1084 = vmatmul.mubr.bf16.gmra.mxu0 %v950
        %v1085 = vpop.f32.mrf.mxu0
        %v1086 = vadd.f32 %v985, %v1085
        %v1087 = vpop.f32.mrf.mxu0
        %v1088 = vpop.f32.mrf.mxu0
        %v1089 = vadd.f32 %v985, %v1088
        %v1090 = vpop.f32.mrf.mxu0
        %1091 = vmatprep.mubr.bf16.mxu0 0
        %1092 = vmatmul.mubr.bf16.gmra.mxu0 %v951
        %v1093 = vpop.f32.mrf.mxu0
        %v1094 = vadd.f32 %v985, %v1093
        %v1095 = vpop.f32.mrf.mxu0
        %v1096 = vpop.f32.mrf.mxu0
        %v1097 = vadd.f32 %v985, %v1096
        %v1098 = vpop.f32.mrf.mxu0
        %1099 = vmatprep.mubr.bf16.mxu0 0
        %1100 = vmatmul.mubr.bf16.gmra.mxu0 %v952
        %v1101 = vpop.f32.mrf.mxu0
        %v1102 = vadd.f32 %v985, %v1101
        %v1103 = vpop.f32.mrf.mxu0
        %v1104 = vpop.f32.mrf.mxu0
        %v1105 = vadd.f32 %v985, %v1104
        %v1106 = vpop.f32.mrf.mxu0
        %1107 = vmatprep.mubr.bf16.mxu0 0
        %1108 = vmatmul.mubr.bf16.gmra.mxu0 %v953
        %v1109 = vpop.f32.mrf.mxu0
        %v1110 = vadd.f32 %v985, %v1109
        %v1111 = vpop.f32.mrf.mxu0
        %v1112 = vpop.f32.mrf.mxu0
        %v1113 = vadd.f32 %v985, %v1112
        %v1114 = vpop.f32.mrf.mxu0
        %1115 = vmatprep.mubr.bf16.mxu0 0
        %1116 = vmatmul.mubr.bf16.gmra.mxu0 %v954
        %v1117 = vpop.f32.mrf.mxu0
        %v1118 = vadd.f32 %v985, %v1117
        %v1119 = vpop.f32.mrf.mxu0
        %v1120 = vpop.f32.mrf.mxu0
        %v1121 = vadd.f32 %v985, %v1120
        %v1122 = vpop.f32.mrf.mxu0
        %1123 = vmatprep.mubr.bf16.mxu0 0
        %1124 = vmatmul.mubr.bf16.gmra.mxu0 %v955
        %v1125 = vpop.f32.mrf.mxu0
        %v1126 = vadd.f32 %v985, %v1125
        %v1127 = vpop.f32.mrf.mxu0
        %v1128 = vpop.f32.mrf.mxu0
        %v1129 = vadd.f32 %v985, %v1128
        %v1130 = vpop.f32.mrf.mxu0
        %1131 = vmatprep.mubr.bf16.mxu0 0
        %1132 = vmatmul.mubr.bf16.gmra.mxu0 %v956
        %v1133 = vpop.f32.mrf.mxu0
        %v1134 = vadd.f32 %v985, %v1133
        %v1135 = vpop.f32.mrf.mxu0
        %v1136 = vpop.f32.mrf.mxu0
        %v1137 = vadd.f32 %v985, %v1136
        %v1138 = vpop.f32.mrf.mxu0
        %1139 = vmatprep.mubr.bf16.mxu0 0
        %1140 = vmatmul.mubr.bf16.gmra.mxu0 %v957
        %v1141 = vpop.f32.mrf.mxu0
        %v1142 = vadd.f32 %v985, %v1141
        %v1143 = vpop.f32.mrf.mxu0
        %v1144 = vpop.f32.mrf.mxu0
        %v1145 = vadd.f32 %v985, %v1144
        %v1146 = vpop.f32.mrf.mxu0
        %1147 = vmatprep.mubr.bf16.mxu0 0
        %1148 = vmatmul.mubr.bf16.gmra.mxu0 %v958
        %v1149 = vpop.f32.mrf.mxu0
        %v1150 = vadd.f32 %v985, %v1149
        %v1151 = vpop.f32.mrf.mxu0
        %v1152 = vpop.f32.mrf.mxu0
        %v1153 = vadd.f32 %v985, %v1152
        %v1154 = vpop.f32.mrf.mxu0
        %1155 = vmatprep.mubr.bf16.mxu0 0
        %1156 = vmatmul.mubr.bf16.gmra.mxu0 %v959
        %v1157 = vpop.f32.mrf.mxu0
        %v1158 = vadd.f32 %v985, %v1157
        %v1159 = vpop.f32.mrf.mxu0
        %v1160 = vpop.f32.mrf.mxu0
        %v1161 = vadd.f32 %v985, %v1160
        %v1162 = vpop.f32.mrf.mxu0
        %1163 = vmatprep.mubr.bf16.mxu0 0
        %1164 = vmatmul.mubr.bf16.gmra.mxu0 %v960
        %v1165 = vpop.f32.mrf.mxu0
        %v1166 = vadd.f32 %v985, %v1165
        %v1167 = vpop.f32.mrf.mxu0
        %v1168 = vpop.f32.mrf.mxu0
        %v1169 = vadd.f32 %v985, %v1168
        %v1170 = vpop.f32.mrf.mxu0
        %1171 = vmatprep.mubr.bf16.mxu0 0
        %1172 = vmatmul.mubr.bf16.gmra.mxu0 %v961
        %v1173 = vpop.f32.mrf.mxu0
        %v1174 = vadd.f32 %v985, %v1173
        %v1175 = vpop.f32.mrf.mxu0
        %v1176 = vpop.f32.mrf.mxu0
        %v1177 = vadd.f32 %v985, %v1176
        %v1178 = vpop.f32.mrf.mxu0
        %1179 = vmatprep.mubr.bf16.mxu0 0
        %1180 = vmatmul.mubr.bf16.gmra.mxu0 %v962
        %v1181 = vpop.f32.mrf.mxu0
        %v1182 = vadd.f32 %v985, %v1181
        %v1183 = vpop.f32.mrf.mxu0
        %v1184 = vpop.f32.mrf.mxu0
        %v1185 = vadd.f32 %v985, %v1184
        %v1186 = vpop.f32.mrf.mxu0
        %1187 = vmatprep.mubr.bf16.mxu0 0
        %1188 = vmatmul.mubr.bf16.gmra.mxu0 %v963
        %v1189 = vpop.f32.mrf.mxu0
        %v1190 = vadd.f32 %v985, %v1189
        %v1191 = vpop.f32.mrf.mxu0
        %v1192 = vpop.f32.mrf.mxu0
        %v1193 = vadd.f32 %v985, %v1192
        %v1194 = vpop.f32.mrf.mxu0
        %1195 = vdwg.mxu0
        %v1196 = vadd.f32 %v261, %v1070
        %v1197 = vadd.f32 %v262, %v1073
        %v1198 = vadd.f32 %v263, %v1078
        %v1199 = vadd.f32 %v264, %v1081
        %v1200 = vadd.f32 %v265, %v1086
        %v1201 = vadd.f32 %v266, %v1089
        %v1202 = vadd.f32 %v267, %v1094
        %v1203 = vadd.f32 %v268, %v1097
        %v1204 = vadd.f32 %v269, %v1102
        %v1205 = vadd.f32 %v270, %v1105
        %v1206 = vadd.f32 %v271, %v1110
        %v1207 = vadd.f32 %v272, %v1113
        %v1208 = vadd.f32 %v273, %v1118
        %v1209 = vadd.f32 %v274, %v1121
        %v1210 = vadd.f32 %v275, %v1126
        %v1211 = vadd.f32 %v276, %v1129
        %v1212 = vadd.f32 %v277, %v1134
        %v1213 = vadd.f32 %v278, %v1137
        %v1214 = vadd.f32 %v279, %v1142
        %v1215 = vadd.f32 %v280, %v1145
        %v1216 = vadd.f32 %v281, %v1150
        %v1217 = vadd.f32 %v282, %v1153
        %v1218 = vadd.f32 %v283, %v1158
        %v1219 = vadd.f32 %v284, %v1161
        %v1220 = vadd.f32 %v285, %v1166
        %v1221 = vadd.f32 %v286, %v1169
        %v1222 = vadd.f32 %v287, %v1174
        %v1223 = vadd.f32 %v288, %v1177
        %v1224 = vadd.f32 %v289, %v1182
        %v1225 = vadd.f32 %v290, %v1185
        %v1226 = vadd.f32 %v291, %v1190
        %v1227 = vadd.f32 %v292, %v1193
        %1228 = vst [vmem:[%s257] sm:$0xff] %v1196
        %1229 = vst [vmem:[%s257 + $0x8] sm:$0xff] %v1197
        %1230 = vst [vmem:[%s257 + $0x10] sm:$0xff] %v1198
        %1231 = vst [vmem:[%s257 + $0x18] sm:$0xff] %v1199
        %1232 = vst [vmem:[%s257 + $0x20] sm:$0xff] %v1200
        %1233 = vst [vmem:[%s257 + $0x28] sm:$0xff] %v1201
        %1234 = vst [vmem:[%s257 + $0x30] sm:$0xff] %v1202
        %1235 = vst [vmem:[%s257 + $0x38] sm:$0xff] %v1203
        %1236 = vst [vmem:[%s257 + $0x40] sm:$0xff] %v1204
        %1237 = vst [vmem:[%s257 + $0x48] sm:$0xff] %v1205
        %1238 = vst [vmem:[%s257 + $0x50] sm:$0xff] %v1206
        %1239 = vst [vmem:[%s257 + $0x58] sm:$0xff] %v1207
        %1240 = vst [vmem:[%s257 + $0x60] sm:$0xff] %v1208
        %1241 = vst [vmem:[%s257 + $0x68] sm:$0xff] %v1209
        %1242 = vst [vmem:[%s257 + $0x70] sm:$0xff] %v1210
        %1243 = vst [vmem:[%s257 + $0x78] sm:$0xff] %v1211
        %1244 = vst [vmem:[%s257 + $0x80] sm:$0xff] %v1212
        %1245 = vst [vmem:[%s257 + $0x88] sm:$0xff] %v1213
        %1246 = vst [vmem:[%s257 + $0x90] sm:$0xff] %v1214
        %1247 = vst [vmem:[%s257 + $0x98] sm:$0xff] %v1215
        %1248 = vst [vmem:[%s257 + $0xa0] sm:$0xff] %v1216
        %1249 = vst [vmem:[%s257 + $0xa8] sm:$0xff] %v1217
        %1250 = vst [vmem:[%s257 + $0xb0] sm:$0xff] %v1218
        %1251 = vst [vmem:[%s257 + $0xb8] sm:$0xff] %v1219
        %1252 = vst [vmem:[%s257 + $0xc0] sm:$0xff] %v1220
        %1253 = vst [vmem:[%s257 + $0xc8] sm:$0xff] %v1221
        %1254 = vst [vmem:[%s257 + $0xd0] sm:$0xff] %v1222
        %1255 = vst [vmem:[%s257 + $0xd8] sm:$0xff] %v1223
        %1256 = vst [vmem:[%s257 + $0xe0] sm:$0xff] %v1224
        %1257 = vst [vmem:[%s257 + $0xe8] sm:$0xff] %v1225
        %1258 = vst [vmem:[%s257 + $0xf0] sm:$0xff] %v1226
        %1259 = vst [vmem:[%s257 + $0xf8] sm:$0xff] %v1227
        %s1260 = sand.u32 %s141, 1
        %s1261 = scalar_lea.sflag [#allocation4], %s1260
        %s1262 = sand.u32 %s141, 1
        %s1263 = smul.addr %s1262, 256
        %s1264 = scalar_lea.vmem [#allocation7], %s1263
        // Predicated region
        $region49: #{tpu_custom_call.1} parent=39 // pred_check
          %p1265 = pneg %p151
        $region50: #{tpu_custom_call.1} parent=39 // pred_check_branch
          %1267 = sbr.rel (%p1265) target = $region52
        $region51: #{tpu_custom_call.1} parent=39 // pred_region
          %s1268 = smul.u32 32, %s23
          %s1270 = ssub.s32 4096, 4096
          %1271 = vsyncadd %s1261, %s1270
          %s1272 = smul.addr %s1268, 128
          %s1273 = scalar_lea.hbm %s5, %s1272
          %s1274 = sshll.u32 %s1264, 4
          %s1275 = int_to_ptr.vmem [resolvable:$true] %s1274
          %1280 = dma.vmem_to_hbm [thread:$0]  %s1275, 4096, %s1273, %s1261, 128, 128, 8
        $region52: #{tpu_custom_call.1} parent=39 // pred_fallthru
          _
      $region40: #{tpu_custom_call.1} parent=5 // pred_fallthru
        _
      %p1281 = scmp.le.s32.totalorder 2, %s18
      // Predicated region
      $region53: #{tpu_custom_call.1} parent=5 // pred_check
        %p1282 = pneg %p1281
      $region54: #{tpu_custom_call.1} parent=5 // pred_check_branch
        %1284 = sbr.rel (%p1282) target = $region56
      $region55: #{tpu_custom_call.1} parent=5 // pred_region
        %s1285 = ssub.s32 %s18, 2
        // Predicated region
        $region57: #{tpu_custom_call.1} parent=55 // pred_check
          %p1286 = pneg %p157
        $region58: #{tpu_custom_call.1} parent=55 // pred_check_branch
          %1288 = sbr.rel (%p1286) target = $region60
        $region59: #{tpu_custom_call.1} parent=55 // pred_region
          %s1289 = sand.u32 %s142, 1
          %s1290 = scalar_lea.sflag [#allocation4], %s1289
          %s1291 = sand.u32 %s142, 1
          %s1292 = smul.addr %s1291, 256
          %s1293 = scalar_lea.vmem [#allocation7], %s1292
          %1294 = dma.done %s1290, 4096
        $region60: #{tpu_custom_call.1} parent=55 // pred_fallthru
          _
      $region56: #{tpu_custom_call.1} parent=5 // pred_fallthru
        _
    $region6: #{tpu_custom_call.1} parent=1 // loop_footer
      %s22 = sadd.s32 1, %s18
    $region7: #{tpu_custom_call.1} parent=1 // loop_footer_branch
      %17 = sbr.rel target = $region3
    $region8: #{tpu_custom_call.1} parent=1 // loop_exit
      _
    %1295 = vsyncpa [#allocation3], 1
    %s1296 = scalar_lea.sflag [#allocation3], 1
    %1297 = vsyncpa %s1296, 1
    %1298 = vsyncpa [#allocation6], 1
    %1299 = vsyncpa [#allocation4], 1
    %s1300 = scalar_lea.sflag [#allocation4], 1
    %1301 = vsyncpa %s1300, 1

</llo_original>
